<compile_context>
chip_gen: v7x
topology: tpu7x:2x2x1
jax: 0.10.0
libtpu: 0.0.40
codegen_flags: <defaults>
</compile_context>

<pallas_src>
import functools

import jax
import jax.numpy as jnp
from jax.experimental import pallas as pl
from jax.experimental.pallas import tpu as pltpu


def _parallel_predicate_kernel(x_ref, w_ref, b_ref, o_ref):
    # x_ref: [tb, F]   one batch tile (pipelined HBM->VMEM)
    # w_ref: [F,  S]   all parallel steps' weight columns (VMEM-resident)
    # b_ref: [1,  S]   all parallel steps' biases (VMEM-resident)
    # o_ref: [tb, S]   per-row, per-step predicate probabilities
    logits = jnp.dot(x_ref[...], w_ref[...], preferred_element_type=jnp.float32)
    o_ref[...] = jax.nn.sigmoid(logits + b_ref[...])


@functools.partial(jax.jit, static_argnames=("block_rows",))
def _fused_scores_and_losses(x, w, b, block_rows=512):
    """scores = sigmoid(x @ w + b) via a batch-tiled Pallas kernel, plus
    per-step and total feat/reg losses.  x:[B,F] f32, w:[F,S] f32, b:[1,S]."""
    batch, feat = x.shape
    n_steps = w.shape[1]
    tb = min(block_rows, batch)
    grid = (pl.cdiv(batch, tb),)

    scores = pl.pallas_call(
        _parallel_predicate_kernel,
        out_shape=jax.ShapeDtypeStruct((batch, n_steps), jnp.float32),
        grid=grid,
        in_specs=[
            pl.BlockSpec((tb, feat), lambda i: (i, 0)),        # x: tile over batch
            pl.BlockSpec((feat, n_steps), lambda i: (0, 0)),   # W: constant block
            pl.BlockSpec((1, n_steps), lambda i: (0, 0)),      # b: constant block
        ],
        out_specs=pl.BlockSpec((tb, n_steps), lambda i: (i, 0)),
        compiler_params=pltpu.CompilerParams(
            dimension_semantics=("parallel",),
        ),
    )(x, w, b)

    # Tiny [B, S] reductions fused by XLA inside this jit; kept outside the
    # kernel so the batch grid axis stays "parallel" (megacore-shardable).
    feat_losses = jnp.mean(1.0 - scores, axis=0)              # [S]
    reg_losses = jnp.mean(scores * (1.0 - scores), axis=0)    # [S]
    feat_total = jnp.sum(feat_losses)                         # scalar
    reg_total = jnp.sum(reg_losses)                           # scalar
    return scores, feat_losses, reg_losses, feat_total, reg_total


class StepModule:
    """Parent class of each processing step's module (JAX port)."""

    def __init__(self, id: str, all_mid_output: dict):
        self.id = id
        self.all_mid_output = all_mid_output
        self.all_mid_output[id] = {}

    def clear_mid_output(self):
        self.all_mid_output[self.id].clear()

    @property
    def mid_output(self):
        return self.all_mid_output[self.id]


class PredicateStep(StepModule):
    """Concrete stand-in step: linear+sigmoid predicate over x's feature axis."""

    def __init__(self, id: str, all_mid_output: dict, feat_dim: int, seed: int):
        super().__init__(id, all_mid_output)
        kw, kb = jax.random.split(jax.random.PRNGKey(seed))
        self.w = jax.random.normal(kw, (feat_dim,), dtype=jnp.float32) * 0.1
        self.b = jax.random.normal(kb, (), dtype=jnp.float32) * 0.1

    def forward(self, x):
        # Standalone (un-fused) path: same kernel, S = 1.
        scores, feat_losses, reg_losses, _, _ = _fused_scores_and_losses(
            x, self.w[:, None], self.b.reshape(1, 1)
        )
        self.mid_output["score"] = scores[:, 0]
        return feat_losses[0], reg_losses[0]

    __call__ = forward


class ParallelSteps(StepModule):
    """A step module that contains a list of parallel steps."""

    def __init__(self, id: str, all_mid_output: dict, steps: list):
        super().__init__(id, all_mid_output)
        self.steps = steps
        # All steps score the same x -> stack their parameters once so forward()
        # issues a single fused kernel (x read from HBM exactly once).
        self._fusable = bool(steps) and all(
            isinstance(s, PredicateStep) for s in steps
        )
        if self._fusable:
            self._w_stacked = jnp.stack([s.w for s in steps], axis=1)   # [F, S]
            self._b_stacked = jnp.stack([s.b for s in steps])[None, :]  # [1, S]

    def clear_mid_output(self):
        super().clear_mid_output()
        for step in self.steps:
            step.clear_mid_output()

    def forward(self, x):
        if self._fusable:
            scores, feat_losses, reg_losses, feat_total, reg_total = (
                _fused_scores_and_losses(x, self._w_stacked, self._b_stacked)
            )
            for i, step in enumerate(self.steps):
                step.mid_output["score"] = scores[:, i]

            # Reference semantics: keep only truthy (nonzero) per-step losses,
            # then sum.  Dropping exactly-zero terms leaves the sum unchanged,
            # so the fused device totals are reused; only the all-filtered
            # case needs the reference's `sum([]) == 0`.  One host transfer of
            # each [S] vector replaces 2*S per-scalar syncs.
            feat_host = jax.device_get(feat_losses)
            reg_host = jax.device_get(reg_losses)
            any_feat = any(bool(v) for v in feat_host)
            any_reg = any(bool(v) for v in reg_host)
            feat_loss = feat_total if any_feat else 0
            reg_loss = reg_total if any_reg else 0
            return (feat_loss, reg_loss)

        # Fallback: faithful sequential loop over arbitrary steps.
        all_feat_loss = []
        all_reg_loss = []
        for step in self.steps:
            feat_loss, reg_loss = step(x)
            if feat_loss:
                all_feat_loss.append(feat_loss)
            if reg_loss:
                all_reg_loss.append(reg_loss)
        return (sum(all_feat_loss), sum(all_reg_loss))

    __call__ = forward


if __name__ == "__main__":
    # (8,128)-aligned; two 512-row grid steps -> exercises the pipelined grid.
    batch, feat, n_steps = 1024, 128, 4
    x = jax.random.normal(jax.random.PRNGKey(0), (batch, feat), dtype=jnp.float32)

    all_mid_output = {}
    steps = [
        PredicateStep(f"pred_{i}", all_mid_output, feat, seed=i + 1)
        for i in range(n_steps)
    ]
    parallel = ParallelSteps("parallel", all_mid_output, steps)

    feat_loss, reg_loss = parallel(x)
    feat_loss = jax.block_until_ready(feat_loss)
    reg_loss = jax.block_until_ready(reg_loss)

    # Cross-check the fused multi-step kernel against the per-step (S=1) path.
    fused_scores = {s.id: s.mid_output["score"] for s in steps}
    parallel.clear_mid_output()
    ref_feat, ref_reg = [], []
    for s in steps:
        fl, rl = s(x)
        ref_feat.append(fl)
        ref_reg.append(rl)
    assert jnp.allclose(feat_loss, sum(ref_feat), atol=1e-5, rtol=1e-5)
    assert jnp.allclose(reg_loss, sum(ref_reg), atol=1e-5, rtol=1e-5)

    for s in steps:
        p = s.mid_output["score"]
        assert p.shape == (batch,)
        assert bool(jnp.all((p >= 0.0) & (p <= 1.0)))
        assert bool(jnp.allclose(fused_scores[s.id], p, atol=1e-5, rtol=1e-5))

    assert feat_loss.shape == () and reg_loss.shape == ()
    print("KERNEL_OK")
</pallas_src>

<mosaic_0001>
module attributes {stable_mosaic.version = 11 : i64} {
  func.func @_parallel_predicate_kernel(%arg0: i32, %arg1: memref<512x128xf32, #tpu.memory_space<vmem>>, %arg2: memref<128x4xf32, #tpu.memory_space<vmem>>, %arg3: memref<1x4xf32, #tpu.memory_space<vmem>>, %arg4: memref<512x4xf32, #tpu.memory_space<vmem>>) attributes {dimension_semantics = [#tpu.dimension_semantics<parallel>], iteration_bounds = array<i64: 2>, scalar_prefetch = 0 : i64, scratch_operands = 0 : i64, tpu.core_type = #tpu.core_type<tc>, window_params = [{transform_indices = @transform_0, window_bounds = array<i64: 512, 128>}, {pipeline_mode = #tpu.pipeline_mode<synchronous>, transform_indices = @transform_1, window_bounds = array<i64: 128, 4>}, {pipeline_mode = #tpu.pipeline_mode<synchronous>, transform_indices = @transform_2, window_bounds = array<i64: 1, 4>}, {transform_indices = @transform_3, window_bounds = array<i64: 512, 4>}]} {
    %c0 = arith.constant 0 : index
    %c0_0 = arith.constant 0 : index
    %0 = vector.load %arg1[%c0, %c0_0] : memref<512x128xf32, #tpu.memory_space<vmem>>, vector<512x128xf32>
    %c0_1 = arith.constant 0 : index
    %c0_2 = arith.constant 0 : index
    %1 = vector.load %arg2[%c0_1, %c0_2] : memref<128x4xf32, #tpu.memory_space<vmem>>, vector<128x4xf32>
    %cst = arith.constant dense<0.000000e+00> : vector<512x4xf32>
    %2 = tpu.matmul %0, %1, %cst {dimension_numbers = #tpu.dot_dimension_numbers<[1], [0], [0], [1], [0, 0, 1, 1], [], []>} : vector<512x128xf32>, vector<128x4xf32>, vector<512x4xf32> -> vector<512x4xf32>
    %c0_3 = arith.constant 0 : index
    %c0_4 = arith.constant 0 : index
    %3 = vector.load %arg3[%c0_3, %c0_4] : memref<1x4xf32, #tpu.memory_space<vmem>>, vector<1x4xf32>
    %4 = vector.broadcast %3 : vector<1x4xf32> to vector<512x4xf32>
    %5 = arith.addf %2, %4 : vector<512x4xf32>
    %6 = arith.negf %5 : vector<512x4xf32>
    %7 = math.exp %6 : vector<512x4xf32>
    %cst_5 = arith.constant 1.000000e+00 : f32
    %8 = vector.broadcast %cst_5 : f32 to vector<512x4xf32>
    %9 = arith.addf %8, %7 : vector<512x4xf32>
    %10 = arith.divf %8, %9 : vector<512x4xf32>
    %c0_6 = arith.constant 0 : index
    %c0_7 = arith.constant 0 : index
    %11 = vector.load %arg4[%c0_6, %c0_7] : memref<512x4xf32, #tpu.memory_space<vmem>>, vector<512x4xf32>
    tpu.vector_store %arg4[%c0_6, %c0_7], %10 {strides = array<i32>} : memref<512x4xf32, #tpu.memory_space<vmem>>, vector<512x4xf32>,
    return
  }
  func.func @transform_0(%arg0: i32) -> (i32, i32) {
    %c0_i32 = arith.constant 0 : i32
    %c0_i32_0 = arith.constant 0 : i32
    return %arg0, %c0_i32 : i32, i32
  }
  func.func @transform_1(%arg0: i32) -> (i32, i32) {
    %c0_i32 = arith.constant 0 : i32
    %c0_i32_0 = arith.constant 0 : i32
    %c0_i32_1 = arith.constant 0 : i32
    return %c0_i32, %c0_i32_0 : i32, i32
  }
  func.func @transform_2(%arg0: i32) -> (i32, i32) {
    %c0_i32 = arith.constant 0 : i32
    %c0_i32_0 = arith.constant 0 : i32
    %c0_i32_1 = arith.constant 0 : i32
    return %c0_i32, %c0_i32_0 : i32, i32
  }
  func.func @transform_3(%arg0: i32) -> (i32, i32) {
    %c0_i32 = arith.constant 0 : i32
    %c0_i32_0 = arith.constant 0 : i32
    return %arg0, %c0_i32 : i32, i32
  }
}

</mosaic_0001>

<llo_original>
// kernel: _fused_scores_and_losses.1
$region0: #{_fused_scores_and_losses.1}
  #allocation0 [shape = 'u32[]', space=smem, size = 0x4, offset = 0x4, fixed_abs, tag = 'smem constant byte address 0x4 - core index']
  #allocation1 [shape = 'u32[144,128]{1,0:T(1,128)}', space=vmem, size = 0x12000, scoped, tag = 'internal scratch']
  %s0 = inlined_call_operand.hbm [shape: f32[1024,128], index: 0, kind: input, shape index: {}]
  %s1 = inlined_call_operand.vmem [shape: f32[128,4], index: 1, kind: input, shape index: {}]
  %s2 = inlined_call_operand.vmem [shape: f32[1,4], index: 2, kind: input, shape index: {}]
  %s3 = inlined_call_operand.vmem [shape: f32[1024,4], index: 3, kind: output, shape index: {}]
  %s4 = sld [smem:[#allocation0]]
  $region49: #{_fused_scores_and_losses.1} parent=0
    _
  %s6 = ssub.s32 1, %s4
  %s7 = scalar_select 0, %s6, %s4
  $region1: #{_fused_scores_and_losses.1} parent=0
    #allocation2 [shape = 'u8[524288]{0}', space=vmem, size = 0x80000, scoped, tag = 'input window, operand 0']
    #allocation3 [shape = 's32[2]{0}', space=sflag, size = 0x8, scoped, tag = 'scoped memory for _fused_scores_and_losses.1']
    %8 = vsyncpa [#allocation3], 0
    %s9 = scalar_lea.sflag [#allocation3], 1
    %10 = vsyncpa %s9, 0
    loop: start=0, step=1, limit=4
    $region2: #{_fused_scores_and_losses.1} parent=1 // loop_pre_header
      _
    $region3: #{_fused_scores_and_losses.1} parent=1 // loop_header
      %s12 = sphi 0, %s16
      %p13 = scmp.ge.s32.totalorder %s12, 4
      %s22 = sphi 0, %s24
      %s25 = sphi 0, %s22
      %s26 = sphi 0, %s25
      %s42 = sphi 0, %s26
      %s46 = sphi 0, %s46
      %s48 = sphi 0, %s46
      %s49 = sphi 0, %s48
      %s63 = sphi 0, %s49
      %s67 = sphi 0, %s67
      %s69 = sphi 0, %s67
      %s70 = sphi 0, %s69
      %s84 = sphi 0, %s70
      %s90 = sphi 0, %s92
      %s93 = sphi 0, %s90
      %s94 = sphi 0, %s93
      %s110 = sphi 0, %s94
    $region4: #{_fused_scores_and_losses.1} parent=1 // loop_header_branch
      %15 = sbr.rel (%p13) target = $region8
    $region5: #{_fused_scores_and_losses.1} parent=1 // loop_body
      %s17 = ssub.s32 %s12, 1
      %s18 = ssub.s32 %s12, 2
      %s19 = sadd.s32 %s12, 1
      %s20 = ssub.s32 %s12, %s19
      %p21 = scmp.eq.s32.totalorder %s20, 0
      %s23 = sadd.s32 %s22, 1
      %s24 = scalar_select %p21, %s22, %s23
      %p27 = pneg %p21
      %p28 = scmp.eq.s32.totalorder %s12, 1
      %p29 = por %p27, %p28
      %p30 = scmp.ne.s32.totalorder %s22, %s25
      %p31 = scmp.eq.s32.totalorder %s12, 0
      %p32 = por %p30, %p31
      %p33 = scmp.ne.s32.totalorder %s22, %s25
      %p34 = scmp.eq.s32.totalorder %s17, 1
      %p35 = por %p33, %p34
      %p36 = scmp.ne.s32.totalorder %s25, %s26
      %p37 = scmp.eq.s32.totalorder %s17, 0
      %p38 = por %p36, %p37
      %p39 = scmp.ne.s32.totalorder %s25, %s26
      %p40 = scmp.eq.s32.totalorder %s18, 1
      %p41 = por %p39, %p40
      %p43 = scmp.ne.s32.totalorder %s26, %s42
      %p44 = scmp.eq.s32.totalorder %s18, 0
      %p45 = por %p43, %p44
      %s47 = sadd.s32 %s46, 1
      %p50 = scmp.eq.s32.totalorder %s12, 1
      %p51 = scmp.ne.s32.totalorder %s46, %s48
      %p52 = scmp.eq.s32.totalorder %s12, 0
      %p53 = por %p51, %p52
      %p54 = scmp.ne.s32.totalorder %s46, %s48
      %p55 = scmp.eq.s32.totalorder %s17, 1
      %p56 = por %p54, %p55
      %p57 = scmp.ne.s32.totalorder %s48, %s49
      %p58 = scmp.eq.s32.totalorder %s17, 0
      %p59 = por %p57, %p58
      %p60 = scmp.ne.s32.totalorder %s48, %s49
      %p61 = scmp.eq.s32.totalorder %s18, 1
      %p62 = por %p60, %p61
      %p64 = scmp.ne.s32.totalorder %s49, %s63
      %p65 = scmp.eq.s32.totalorder %s18, 0
      %p66 = por %p64, %p65
      %s68 = sadd.s32 %s67, 1
      %p71 = scmp.eq.s32.totalorder %s12, 1
      %p72 = scmp.ne.s32.totalorder %s67, %s69
      %p73 = scmp.eq.s32.totalorder %s12, 0
      %p74 = por %p72, %p73
      %p75 = scmp.ne.s32.totalorder %s67, %s69
      %p76 = scmp.eq.s32.totalorder %s17, 1
      %p77 = por %p75, %p76
      %p78 = scmp.ne.s32.totalorder %s69, %s70
      %p79 = scmp.eq.s32.totalorder %s17, 0
      %p80 = por %p78, %p79
      %p81 = scmp.ne.s32.totalorder %s69, %s70
      %p82 = scmp.eq.s32.totalorder %s18, 1
      %p83 = por %p81, %p82
      %p85 = scmp.ne.s32.totalorder %s70, %s84
      %p86 = scmp.eq.s32.totalorder %s18, 0
      %p87 = por %p85, %p86
      %s88 = ssub.s32 %s12, %s19
      %p89 = scmp.eq.s32.totalorder %s88, 0
      %s91 = sadd.s32 %s90, 1
      %s92 = scalar_select %p89, %s90, %s91
      %p95 = pneg %p89
      %p96 = scmp.eq.s32.totalorder %s12, 1
      %p97 = por %p95, %p96
      %p98 = scmp.ne.s32.totalorder %s90, %s93
      %p99 = scmp.eq.s32.totalorder %s12, 0
      %p100 = por %p98, %p99
      %p101 = scmp.ne.s32.totalorder %s90, %s93
      %p102 = scmp.eq.s32.totalorder %s17, 1
      %p103 = por %p101, %p102
      %p104 = scmp.ne.s32.totalorder %s93, %s94
      %p105 = scmp.eq.s32.totalorder %s17, 0
      %p106 = por %p104, %p105
      %p107 = scmp.ne.s32.totalorder %s93, %s94
      %p108 = scmp.eq.s32.totalorder %s18, 1
      %p109 = por %p107, %p108
      %p111 = scmp.ne.s32.totalorder %s94, %s110
      %p112 = scmp.eq.s32.totalorder %s18, 0
      %p113 = por %p111, %p112
      %p114 = scmp.le.s32.totalorder 1, %s12
      %p115 = scmp.lt.s32.totalorder %s12, 3
      %p116 = pnand %p114, %p115
      %p117 = pneg %p116
      // Predicated region
      $region9: #{_fused_scores_and_losses.1} parent=5 // pred_check
        _
      $region10: #{_fused_scores_and_losses.1} parent=5 // pred_check_branch
        %119 = sbr.rel (%p116) target = $region12
      $region11: #{_fused_scores_and_losses.1} parent=5 // pred_region
        %s120 = ssub.s32 %s12, 1
        // Predicated region
        $region13: #{_fused_scores_and_losses.1} parent=11 // pred_check
          %p121 = pneg %p59
        $region14: #{_fused_scores_and_losses.1} parent=11 // pred_check_branch
          %123 = sbr.rel (%p121) target = $region16
        $region15: #{_fused_scores_and_losses.1} parent=11 // pred_region
          _
        $region16: #{_fused_scores_and_losses.1} parent=11 // pred_fallthru
          _
        // Predicated region
        $region17: #{_fused_scores_and_losses.1} parent=11 // pred_check
          %p124 = pneg %p80
        $region18: #{_fused_scores_and_losses.1} parent=11 // pred_check_branch
          %126 = sbr.rel (%p124) target = $region20
        $region19: #{_fused_scores_and_losses.1} parent=11 // pred_region
          _
        $region20: #{_fused_scores_and_losses.1} parent=11 // pred_fallthru
          _
      $region12: #{_fused_scores_and_losses.1} parent=5 // pred_fallthru
        _
      %p127 = scmp.lt.s32.totalorder %s12, 2
      // Predicated region
      $region21: #{_fused_scores_and_losses.1} parent=5 // pred_check
        %p128 = pneg %p127
      $region22: #{_fused_scores_and_losses.1} parent=5 // pred_check_branch
        %130 = sbr.rel (%p128) target = $region24
      $region23: #{_fused_scores_and_losses.1} parent=5 // pred_region
        // Predicated region
        $region25: #{_fused_scores_and_losses.1} parent=23 // pred_check
          %p131 = pneg %p32
        $region26: #{_fused_scores_and_losses.1} parent=23 // pred_check_branch
          %133 = sbr.rel (%p131) target = $region28
        $region27: #{_fused_scores_and_losses.1} parent=23 // pred_region
          %s134 = sand.u32 %s22, 1
          %s135 = scalar_lea.sflag [#allocation3], %s134
          %s136 = sand.u32 %s22, 1
          %s137 = smul.addr %s136, 512
          %s138 = scalar_lea.vmem [#allocation2], %s137
          %s139 = smul.u32 64, %s12
          %s141 = ssub.s32 8192, 8192
          %142 = vsyncadd %s135, %s141
          %s143 = smul.addr %s139, 128
          %s144 = scalar_lea.hbm %s0, %s143
          %s145 = sshll.u32 %s138, 4
          %s146 = int_to_ptr.vmem [resolvable:$true] %s145
          %151 = dma.hbm_to_vmem [thread:$0]  %s144, 8192, %s146, %s135, 128, 128, 8
        $region28: #{_fused_scores_and_losses.1} parent=23 // pred_fallthru
          _
      $region24: #{_fused_scores_and_losses.1} parent=5 // pred_fallthru
        _
      %p152 = scmp.le.s32.totalorder 1, %s12
      %p153 = scmp.lt.s32.totalorder %s12, 3
      %p154 = pnand %p152, %p153
      %p155 = pneg %p154
      // Predicated region
      $region29: #{_fused_scores_and_losses.1} parent=5 // pred_check
        _
      $region30: #{_fused_scores_and_losses.1} parent=5 // pred_check_branch
        %157 = sbr.rel (%p154) target = $region32
      $region31: #{_fused_scores_and_losses.1} parent=5 // pred_region
        %s158 = ssub.s32 %s12, 1
        %s159 = sand.u32 %s25, 1
        %s160 = scalar_lea.sflag [#allocation3], %s159
        %s161 = sand.u32 %s25, 1
        %s162 = smul.addr %s161, 512
        %s163 = scalar_lea.vmem [#allocation2], %s162
        // Predicated region
        $region33: #{_fused_scores_and_losses.1} parent=31 // pred_check
          %p164 = pneg %p38
        $region34: #{_fused_scores_and_losses.1} parent=31 // pred_check_branch
          %166 = sbr.rel (%p164) target = $region36
        $region35: #{_fused_scores_and_losses.1} parent=31 // pred_region
          %167 = dma.done %s160, 8192
        $region36: #{_fused_scores_and_losses.1} parent=31 // pred_fallthru
          _
        %s168 = sand.u32 %s25, 1
        %s169 = scalar_lea.sflag [#allocation3], %s168
        %s170 = sand.u32 %s25, 1
        %s171 = smul.addr %s170, 512
        %s172 = scalar_lea.vmem [#allocation2], %s171
        %p173 = pneg %p38
        %p174 = pneg %p35
        %p175 = pneg %p59
        %p176 = pneg %p56
        %p177 = pneg %p80
        %p178 = pneg %p77
        %p179 = pneg %p106
        %p180 = pneg %p103
        %s181 = smul.u32 64, %s17
        %p182 = scmp.lt.s32.totalorder %s181, 127
        %s183 = scalar_select %p182, %s181, 127
        %s184 = smul.addr %s183, 8
        %s185 = scalar_lea.vmem %s3, %s184
        %s186 = smul.u32 64, %s17
        %s187 = smul.u32 64, %s17
        %p188 = scmp.lt.s32.totalorder %s187, 127
        %s189 = scalar_select %p188, %s187, 127
        %s190 = smul.addr %s189, 8
        %s191 = scalar_lea.vmem %s3, %s190
        %s192 = smul.u32 64, %s17
        %v193 = vld [vmem:[%s163] sm:$0xff]
        %v194 = vld [vmem:[%s163 + $0x8] sm:$0xff]
        %v195 = vld [vmem:[%s163 + $0x10] sm:$0xff]
        %v196 = vld [vmem:[%s163 + $0x18] sm:$0xff]
        %v197 = vld [vmem:[%s163 + $0x20] sm:$0xff]
        %v198 = vld [vmem:[%s163 + $0x28] sm:$0xff]
        %v199 = vld [vmem:[%s163 + $0x30] sm:$0xff]
        %v200 = vld [vmem:[%s163 + $0x38] sm:$0xff]
        %v201 = vld [vmem:[%s163 + $0x40] sm:$0xff]
        %v202 = vld [vmem:[%s163 + $0x48] sm:$0xff]
        %v203 = vld [vmem:[%s163 + $0x50] sm:$0xff]
        %v204 = vld [vmem:[%s163 + $0x58] sm:$0xff]
        %v205 = vld [vmem:[%s163 + $0x60] sm:$0xff]
        %v206 = vld [vmem:[%s163 + $0x68] sm:$0xff]
        %v207 = vld [vmem:[%s163 + $0x70] sm:$0xff]
        %v208 = vld [vmem:[%s163 + $0x78] sm:$0xff]
        %v209 = vld [vmem:[%s163 + $0x80] sm:$0xff]
        %v210 = vld [vmem:[%s163 + $0x88] sm:$0xff]
        %v211 = vld [vmem:[%s163 + $0x90] sm:$0xff]
        %v212 = vld [vmem:[%s163 + $0x98] sm:$0xff]
        %v213 = vld [vmem:[%s163 + $0xa0] sm:$0xff]
        %v214 = vld [vmem:[%s163 + $0xa8] sm:$0xff]
        %v215 = vld [vmem:[%s163 + $0xb0] sm:$0xff]
        %v216 = vld [vmem:[%s163 + $0xb8] sm:$0xff]
        %v217 = vld [vmem:[%s163 + $0xc0] sm:$0xff]
        %v218 = vld [vmem:[%s163 + $0xc8] sm:$0xff]
        %v219 = vld [vmem:[%s163 + $0xd0] sm:$0xff]
        %v220 = vld [vmem:[%s163 + $0xd8] sm:$0xff]
        %v221 = vld [vmem:[%s163 + $0xe0] sm:$0xff]
        %v222 = vld [vmem:[%s163 + $0xe8] sm:$0xff]
        %v223 = vld [vmem:[%s163 + $0xf0] sm:$0xff]
        %v224 = vld [vmem:[%s163 + $0xf8] sm:$0xff]
        %v225 = vld [vmem:[%s163 + $0x100] sm:$0xff]
        %v226 = vld [vmem:[%s163 + $0x108] sm:$0xff]
        %v227 = vld [vmem:[%s163 + $0x110] sm:$0xff]
        %v228 = vld [vmem:[%s163 + $0x118] sm:$0xff]
        %v229 = vld [vmem:[%s163 + $0x120] sm:$0xff]
        %v230 = vld [vmem:[%s163 + $0x128] sm:$0xff]
        %v231 = vld [vmem:[%s163 + $0x130] sm:$0xff]
        %v232 = vld [vmem:[%s163 + $0x138] sm:$0xff]
        %v233 = vld [vmem:[%s163 + $0x140] sm:$0xff]
        %v234 = vld [vmem:[%s163 + $0x148] sm:$0xff]
        %v235 = vld [vmem:[%s163 + $0x150] sm:$0xff]
        %v236 = vld [vmem:[%s163 + $0x158] sm:$0xff]
        %v237 = vld [vmem:[%s163 + $0x160] sm:$0xff]
        %v238 = vld [vmem:[%s163 + $0x168] sm:$0xff]
        %v239 = vld [vmem:[%s163 + $0x170] sm:$0xff]
        %v240 = vld [vmem:[%s163 + $0x178] sm:$0xff]
        %v241 = vld [vmem:[%s163 + $0x180] sm:$0xff]
        %v242 = vld [vmem:[%s163 + $0x188] sm:$0xff]
        %v243 = vld [vmem:[%s163 + $0x190] sm:$0xff]
        %v244 = vld [vmem:[%s163 + $0x198] sm:$0xff]
        %v245 = vld [vmem:[%s163 + $0x1a0] sm:$0xff]
        %v246 = vld [vmem:[%s163 + $0x1a8] sm:$0xff]
        %v247 = vld [vmem:[%s163 + $0x1b0] sm:$0xff]
        %v248 = vld [vmem:[%s163 + $0x1b8] sm:$0xff]
        %v249 = vld [vmem:[%s163 + $0x1c0] sm:$0xff]
        %v250 = vld [vmem:[%s163 + $0x1c8] sm:$0xff]
        %v251 = vld [vmem:[%s163 + $0x1d0] sm:$0xff]
        %v252 = vld [vmem:[%s163 + $0x1d8] sm:$0xff]
        %v253 = vld [vmem:[%s163 + $0x1e0] sm:$0xff]
        %v254 = vld [vmem:[%s163 + $0x1e8] sm:$0xff]
        %v255 = vld [vmem:[%s163 + $0x1f0] sm:$0xff]
        %v256 = vld [vmem:[%s163 + $0x1f8] sm:$0xff]
        %v257 = vld [vmem:[%s1] sm:$0xff]
        %v258 = vld [vmem:[%s1 + $0x8] sm:$0xff]
        %v259 = vld [vmem:[%s1 + $0x10] sm:$0xff]
        %v260 = vld [vmem:[%s1 + $0x18] sm:$0xff]
        %v261 = vld [vmem:[%s1 + $0x20] sm:$0xff]
        %v262 = vld [vmem:[%s1 + $0x28] sm:$0xff]
        %v263 = vld [vmem:[%s1 + $0x30] sm:$0xff]
        %v264 = vld [vmem:[%s1 + $0x38] sm:$0xff]
        %v265 = vld [vmem:[%s1 + $0x40] sm:$0xff]
        %v266 = vld [vmem:[%s1 + $0x48] sm:$0xff]
        %v267 = vld [vmem:[%s1 + $0x50] sm:$0xff]
        %v268 = vld [vmem:[%s1 + $0x58] sm:$0xff]
        %v269 = vld [vmem:[%s1 + $0x60] sm:$0xff]
        %v270 = vld [vmem:[%s1 + $0x68] sm:$0xff]
        %v271 = vld [vmem:[%s1 + $0x70] sm:$0xff]
        %v272 = vld [vmem:[%s1 + $0x78] sm:$0xff]
        %v273 = vld [vmem:[%s2] sm:$0x1]
        %v275 = vlaneseq
        %v276 = vshrl.u32 %v275, 7
        %v277 = vsub.s32 0, %v276
        %v278 = vrot.slane %v273, %v277
        %280 = vmatprep.subr.mxu0 0.0
        %281 = vmatpush1.msra.mxu0 %v257
        %282 = vmatprep.subr.mxu0 0.0
        %283 = vmatpush1.msra.mxu0 %v258
        %284 = vmatprep.subr.mxu0 0.0
        %285 = vmatpush1.msra.mxu0 %v259
        %286 = vmatprep.subr.mxu0 0.0
        %287 = vmatpush1.msra.mxu0 %v260
        %288 = vmatprep.subr.mxu0 0.0
        %289 = vmatpush1.msra.mxu0 %v261
        %290 = vmatprep.subr.mxu0 0.0
        %291 = vmatpush1.msra.mxu0 %v262
        %292 = vmatprep.subr.mxu0 0.0
        %293 = vmatpush1.msra.mxu0 %v263
        %294 = vmatprep.subr.mxu0 0.0
        %295 = vmatpush1.msra.mxu0 %v264
        %296 = vmatprep.subr.mxu0 0.0
        %297 = vmatpush1.msra.mxu0 %v265
        %298 = vmatprep.subr.mxu0 0.0
        %299 = vmatpush1.msra.mxu0 %v266
        %300 = vmatprep.subr.mxu0 0.0
        %301 = vmatpush1.msra.mxu0 %v267
        %302 = vmatprep.subr.mxu0 0.0
        %303 = vmatpush1.msra.mxu0 %v268
        %304 = vmatprep.subr.mxu0 0.0
        %305 = vmatpush1.msra.mxu0 %v269
        %306 = vmatprep.subr.mxu0 0.0
        %307 = vmatpush1.msra.mxu0 %v270
        %308 = vmatprep.subr.mxu0 0.0
        %309 = vmatpush1.msra.mxu0 %v271
        %310 = vmatprep.subr.mxu0 0.0
        %311 = vmatpush1.msra.mxu0 %v272
        %312 = vmatprep.subr.mxu0 0.0
        %313 = vmatpush1.msra.mxu0 0.0
        %314 = vmatprep.subr.mxu0 0.0
        %315 = vmatpush1.msra.mxu0 0.0
        %316 = vmatprep.subr.mxu0 0.0
        %317 = vmatpush1.msra.mxu0 0.0
        %318 = vmatprep.subr.mxu0 0.0
        %319 = vmatpush1.msra.mxu0 0.0
        %320 = vmatprep.subr.mxu0 0.0
        %321 = vmatpush1.msra.mxu0 0.0
        %322 = vmatprep.subr.mxu0 0.0
        %323 = vmatpush1.msra.mxu0 0.0
        %324 = vmatprep.subr.mxu0 0.0
        %325 = vmatpush1.msra.mxu0 0.0
        %326 = vmatprep.subr.mxu0 0.0
        %327 = vmatpush1.msra.mxu0 0.0
        %328 = vmatprep.subr.mxu0 0.0
        %329 = vmatpush1.msra.mxu0 0.0
        %330 = vmatprep.subr.mxu0 0.0
        %331 = vmatpush1.msra.mxu0 0.0
        %332 = vmatprep.subr.mxu0 0.0
        %333 = vmatpush1.msra.mxu0 0.0
        %334 = vmatprep.subr.mxu0 0.0
        %335 = vmatpush1.msra.mxu0 0.0
        %336 = vmatprep.subr.mxu0 0.0
        %337 = vmatpush1.msra.mxu0 0.0
        %338 = vmatprep.subr.mxu0 0.0
        %339 = vmatpush1.msra.mxu0 0.0
        %340 = vmatprep.subr.mxu0 0.0
        %341 = vmatpush1.msra.mxu0 0.0
        %342 = vmatprep.subr.mxu0 0.0
        %343 = vmatpush1.msra.mxu0 0.0
        %344 = vmatprep.mubr.f32.mxu0 0.0
        %345 = vmatmul.mubr.f32.gmra.mrb[0].mxu0 %v193
        %v346 = vpop.f32.mrb[0].mxu0
        %v347 = vadd.f32 %v278, %v346
        %v348 = vpop.f32.mrb[0].mxu0
        %349 = vmatprep.mubr.f32.mxu0 0.0
        %350 = vmatmul.mubr.f32.gmra.mrb[0].mxu0 %v194
        %v351 = vpop.f32.mrb[0].mxu0
        %v352 = vadd.f32 %v278, %v351
        %v353 = vpop.f32.mrb[0].mxu0
        %354 = vmatprep.mubr.f32.mxu0 0.0
        %355 = vmatmul.mubr.f32.gmra.mrb[0].mxu0 %v195
        %v356 = vpop.f32.mrb[0].mxu0
        %v357 = vadd.f32 %v278, %v356
        %v358 = vpop.f32.mrb[0].mxu0
        %359 = vmatprep.mubr.f32.mxu0 0.0
        %360 = vmatmul.mubr.f32.gmra.mrb[0].mxu0 %v196
        %v361 = vpop.f32.mrb[0].mxu0
        %v362 = vadd.f32 %v278, %v361
        %v363 = vpop.f32.mrb[0].mxu0
        %364 = vmatprep.mubr.f32.mxu0 0.0
        %365 = vmatmul.mubr.f32.gmra.mrb[0].mxu0 %v197
        %v366 = vpop.f32.mrb[0].mxu0
        %v367 = vadd.f32 %v278, %v366
        %v368 = vpop.f32.mrb[0].mxu0
        %369 = vmatprep.mubr.f32.mxu0 0.0
        %370 = vmatmul.mubr.f32.gmra.mrb[0].mxu0 %v198
        %v371 = vpop.f32.mrb[0].mxu0
        %v372 = vadd.f32 %v278, %v371
        %v373 = vpop.f32.mrb[0].mxu0
        %374 = vmatprep.mubr.f32.mxu0 0.0
        %375 = vmatmul.mubr.f32.gmra.mrb[0].mxu0 %v199
        %v376 = vpop.f32.mrb[0].mxu0
        %v377 = vadd.f32 %v278, %v376
        %v378 = vpop.f32.mrb[0].mxu0
        %379 = vmatprep.mubr.f32.mxu0 0.0
        %380 = vmatmul.mubr.f32.gmra.mrb[0].mxu0 %v200
        %v381 = vpop.f32.mrb[0].mxu0
        %v382 = vadd.f32 %v278, %v381
        %v383 = vpop.f32.mrb[0].mxu0
        %384 = vmatprep.mubr.f32.mxu0 0.0
        %385 = vmatmul.mubr.f32.gmra.mrb[0].mxu0 %v201
        %v386 = vpop.f32.mrb[0].mxu0
        %v387 = vadd.f32 %v278, %v386
        %v388 = vpop.f32.mrb[0].mxu0
        %389 = vmatprep.mubr.f32.mxu0 0.0
        %390 = vmatmul.mubr.f32.gmra.mrb[0].mxu0 %v202
        %v391 = vpop.f32.mrb[0].mxu0
        %v392 = vadd.f32 %v278, %v391
        %v393 = vpop.f32.mrb[0].mxu0
        %394 = vmatprep.mubr.f32.mxu0 0.0
        %395 = vmatmul.mubr.f32.gmra.mrb[0].mxu0 %v203
        %v396 = vpop.f32.mrb[0].mxu0
        %v397 = vadd.f32 %v278, %v396
        %v398 = vpop.f32.mrb[0].mxu0
        %399 = vmatprep.mubr.f32.mxu0 0.0
        %400 = vmatmul.mubr.f32.gmra.mrb[0].mxu0 %v204
        %v401 = vpop.f32.mrb[0].mxu0
        %v402 = vadd.f32 %v278, %v401
        %v403 = vpop.f32.mrb[0].mxu0
        %404 = vmatprep.mubr.f32.mxu0 0.0
        %405 = vmatmul.mubr.f32.gmra.mrb[0].mxu0 %v205
        %v406 = vpop.f32.mrb[0].mxu0
        %v407 = vadd.f32 %v278, %v406
        %v408 = vpop.f32.mrb[0].mxu0
        %409 = vmatprep.mubr.f32.mxu0 0.0
        %410 = vmatmul.mubr.f32.gmra.mrb[0].mxu0 %v206
        %v411 = vpop.f32.mrb[0].mxu0
        %v412 = vadd.f32 %v278, %v411
        %v413 = vpop.f32.mrb[0].mxu0
        %414 = vmatprep.mubr.f32.mxu0 0.0
        %415 = vmatmul.mubr.f32.gmra.mrb[0].mxu0 %v207
        %v416 = vpop.f32.mrb[0].mxu0
        %v417 = vadd.f32 %v278, %v416
        %v418 = vpop.f32.mrb[0].mxu0
        %419 = vmatprep.mubr.f32.mxu0 0.0
        %420 = vmatmul.mubr.f32.gmra.mrb[0].mxu0 %v208
        %v421 = vpop.f32.mrb[0].mxu0
        %v422 = vadd.f32 %v278, %v421
        %v423 = vpop.f32.mrb[0].mxu0
        %424 = vmatprep.mubr.f32.mxu0 0.0
        %425 = vmatmul.mubr.f32.gmra.mrb[0].mxu0 %v209
        %v426 = vpop.f32.mrb[0].mxu0
        %v427 = vadd.f32 %v278, %v426
        %v428 = vpop.f32.mrb[0].mxu0
        %429 = vmatprep.mubr.f32.mxu0 0.0
        %430 = vmatmul.mubr.f32.gmra.mrb[0].mxu0 %v210
        %v431 = vpop.f32.mrb[0].mxu0
        %v432 = vadd.f32 %v278, %v431
        %v433 = vpop.f32.mrb[0].mxu0
        %434 = vmatprep.mubr.f32.mxu0 0.0
        %435 = vmatmul.mubr.f32.gmra.mrb[0].mxu0 %v211
        %v436 = vpop.f32.mrb[0].mxu0
        %v437 = vadd.f32 %v278, %v436
        %v438 = vpop.f32.mrb[0].mxu0
        %439 = vmatprep.mubr.f32.mxu0 0.0
        %440 = vmatmul.mubr.f32.gmra.mrb[0].mxu0 %v212
        %v441 = vpop.f32.mrb[0].mxu0
        %v442 = vadd.f32 %v278, %v441
        %v443 = vpop.f32.mrb[0].mxu0
        %444 = vmatprep.mubr.f32.mxu0 0.0
        %445 = vmatmul.mubr.f32.gmra.mrb[0].mxu0 %v213
        %v446 = vpop.f32.mrb[0].mxu0
        %v447 = vadd.f32 %v278, %v446
        %v448 = vpop.f32.mrb[0].mxu0
        %449 = vmatprep.mubr.f32.mxu0 0.0
        %450 = vmatmul.mubr.f32.gmra.mrb[0].mxu0 %v214
        %v451 = vpop.f32.mrb[0].mxu0
        %v452 = vadd.f32 %v278, %v451
        %v453 = vpop.f32.mrb[0].mxu0
        %454 = vmatprep.mubr.f32.mxu0 0.0
        %455 = vmatmul.mubr.f32.gmra.mrb[0].mxu0 %v215
        %v456 = vpop.f32.mrb[0].mxu0
        %v457 = vadd.f32 %v278, %v456
        %v458 = vpop.f32.mrb[0].mxu0
        %459 = vmatprep.mubr.f32.mxu0 0.0
        %460 = vmatmul.mubr.f32.gmra.mrb[0].mxu0 %v216
        %v461 = vpop.f32.mrb[0].mxu0
        %v462 = vadd.f32 %v278, %v461
        %v463 = vpop.f32.mrb[0].mxu0
        %464 = vmatprep.mubr.f32.mxu0 0.0
        %465 = vmatmul.mubr.f32.gmra.mrb[0].mxu0 %v217
        %v466 = vpop.f32.mrb[0].mxu0
        %v467 = vadd.f32 %v278, %v466
        %v468 = vpop.f32.mrb[0].mxu0
        %469 = vmatprep.mubr.f32.mxu0 0.0
        %470 = vmatmul.mubr.f32.gmra.mrb[0].mxu0 %v218
        %v471 = vpop.f32.mrb[0].mxu0
        %v472 = vadd.f32 %v278, %v471
        %v473 = vpop.f32.mrb[0].mxu0
        %474 = vmatprep.mubr.f32.mxu0 0.0
        %475 = vmatmul.mubr.f32.gmra.mrb[0].mxu0 %v219
        %v476 = vpop.f32.mrb[0].mxu0
        %v477 = vadd.f32 %v278, %v476
        %v478 = vpop.f32.mrb[0].mxu0
        %479 = vmatprep.mubr.f32.mxu0 0.0
        %480 = vmatmul.mubr.f32.gmra.mrb[0].mxu0 %v220
        %v481 = vpop.f32.mrb[0].mxu0
        %v482 = vadd.f32 %v278, %v481
        %v483 = vpop.f32.mrb[0].mxu0
        %484 = vmatprep.mubr.f32.mxu0 0.0
        %485 = vmatmul.mubr.f32.gmra.mrb[0].mxu0 %v221
        %v486 = vpop.f32.mrb[0].mxu0
        %v487 = vadd.f32 %v278, %v486
        %v488 = vpop.f32.mrb[0].mxu0
        %489 = vmatprep.mubr.f32.mxu0 0.0
        %490 = vmatmul.mubr.f32.gmra.mrb[0].mxu0 %v222
        %v491 = vpop.f32.mrb[0].mxu0
        %v492 = vadd.f32 %v278, %v491
        %v493 = vpop.f32.mrb[0].mxu0
        %494 = vmatprep.mubr.f32.mxu0 0.0
        %495 = vmatmul.mubr.f32.gmra.mrb[0].mxu0 %v223
        %v496 = vpop.f32.mrb[0].mxu0
        %v497 = vadd.f32 %v278, %v496
        %v498 = vpop.f32.mrb[0].mxu0
        %499 = vmatprep.mubr.f32.mxu0 0.0
        %500 = vmatmul.mubr.f32.gmra.mrb[0].mxu0 %v224
        %v501 = vpop.f32.mrb[0].mxu0
        %v502 = vadd.f32 %v278, %v501
        %v503 = vpop.f32.mrb[0].mxu0
        %504 = vmatprep.mubr.f32.mxu0 0.0
        %505 = vmatmul.mubr.f32.gmra.mrb[0].mxu0 %v225
        %v506 = vpop.f32.mrb[0].mxu0
        %v507 = vadd.f32 %v278, %v506
        %v508 = vpop.f32.mrb[0].mxu0
        %509 = vmatprep.mubr.f32.mxu0 0.0
        %510 = vmatmul.mubr.f32.gmra.mrb[0].mxu0 %v226
        %v511 = vpop.f32.mrb[0].mxu0
        %v512 = vadd.f32 %v278, %v511
        %v513 = vpop.f32.mrb[0].mxu0
        %514 = vmatprep.mubr.f32.mxu0 0.0
        %515 = vmatmul.mubr.f32.gmra.mrb[0].mxu0 %v227
        %v516 = vpop.f32.mrb[0].mxu0
        %v517 = vadd.f32 %v278, %v516
        %v518 = vpop.f32.mrb[0].mxu0
        %519 = vmatprep.mubr.f32.mxu0 0.0
        %520 = vmatmul.mubr.f32.gmra.mrb[0].mxu0 %v228
        %v521 = vpop.f32.mrb[0].mxu0
        %v522 = vadd.f32 %v278, %v521
        %v523 = vpop.f32.mrb[0].mxu0
        %524 = vmatprep.mubr.f32.mxu0 0.0
        %525 = vmatmul.mubr.f32.gmra.mrb[0].mxu0 %v229
        %v526 = vpop.f32.mrb[0].mxu0
        %v527 = vadd.f32 %v278, %v526
        %v528 = vpop.f32.mrb[0].mxu0
        %529 = vmatprep.mubr.f32.mxu0 0.0
        %530 = vmatmul.mubr.f32.gmra.mrb[0].mxu0 %v230
        %v531 = vpop.f32.mrb[0].mxu0
        %v532 = vadd.f32 %v278, %v531
        %v533 = vpop.f32.mrb[0].mxu0
        %534 = vmatprep.mubr.f32.mxu0 0.0
        %535 = vmatmul.mubr.f32.gmra.mrb[0].mxu0 %v231
        %v536 = vpop.f32.mrb[0].mxu0
        %v537 = vadd.f32 %v278, %v536
        %v538 = vpop.f32.mrb[0].mxu0
        %539 = vmatprep.mubr.f32.mxu0 0.0
        %540 = vmatmul.mubr.f32.gmra.mrb[0].mxu0 %v232
        %v541 = vpop.f32.mrb[0].mxu0
        %v542 = vadd.f32 %v278, %v541
        %v543 = vpop.f32.mrb[0].mxu0
        %544 = vmatprep.mubr.f32.mxu0 0.0
        %545 = vmatmul.mubr.f32.gmra.mrb[0].mxu0 %v233
        %v546 = vpop.f32.mrb[0].mxu0
        %v547 = vadd.f32 %v278, %v546
        %v548 = vpop.f32.mrb[0].mxu0
        %549 = vmatprep.mubr.f32.mxu0 0.0
        %550 = vmatmul.mubr.f32.gmra.mrb[0].mxu0 %v234
        %v551 = vpop.f32.mrb[0].mxu0
        %v552 = vadd.f32 %v278, %v551
        %v553 = vpop.f32.mrb[0].mxu0
        %554 = vmatprep.mubr.f32.mxu0 0.0
        %555 = vmatmul.mubr.f32.gmra.mrb[0].mxu0 %v235
        %v556 = vpop.f32.mrb[0].mxu0
        %v557 = vadd.f32 %v278, %v556
        %v558 = vpop.f32.mrb[0].mxu0
        %559 = vmatprep.mubr.f32.mxu0 0.0
        %560 = vmatmul.mubr.f32.gmra.mrb[0].mxu0 %v236
        %v561 = vpop.f32.mrb[0].mxu0
        %v562 = vadd.f32 %v278, %v561
        %v563 = vpop.f32.mrb[0].mxu0
        %564 = vmatprep.mubr.f32.mxu0 0.0
        %565 = vmatmul.mubr.f32.gmra.mrb[0].mxu0 %v237
        %v566 = vpop.f32.mrb[0].mxu0
        %v567 = vadd.f32 %v278, %v566
        %v568 = vpop.f32.mrb[0].mxu0
        %569 = vmatprep.mubr.f32.mxu0 0.0
        %570 = vmatmul.mubr.f32.gmra.mrb[0].mxu0 %v238
        %v571 = vpop.f32.mrb[0].mxu0
        %v572 = vadd.f32 %v278, %v571
        %v573 = vpop.f32.mrb[0].mxu0
        %574 = vmatprep.mubr.f32.mxu0 0.0
        %575 = vmatmul.mubr.f32.gmra.mrb[0].mxu0 %v239
        %v576 = vpop.f32.mrb[0].mxu0
        %v577 = vadd.f32 %v278, %v576
        %v578 = vpop.f32.mrb[0].mxu0
        %579 = vmatprep.mubr.f32.mxu0 0.0
        %580 = vmatmul.mubr.f32.gmra.mrb[0].mxu0 %v240
        %v581 = vpop.f32.mrb[0].mxu0
        %v582 = vadd.f32 %v278, %v581
        %v583 = vpop.f32.mrb[0].mxu0
        %584 = vmatprep.mubr.f32.mxu0 0.0
        %585 = vmatmul.mubr.f32.gmra.mrb[0].mxu0 %v241
        %v586 = vpop.f32.mrb[0].mxu0
        %v587 = vadd.f32 %v278, %v586
        %v588 = vpop.f32.mrb[0].mxu0
        %589 = vmatprep.mubr.f32.mxu0 0.0
        %590 = vmatmul.mubr.f32.gmra.mrb[0].mxu0 %v242
        %v591 = vpop.f32.mrb[0].mxu0
        %v592 = vadd.f32 %v278, %v591
        %v593 = vpop.f32.mrb[0].mxu0
        %594 = vmatprep.mubr.f32.mxu0 0.0
        %595 = vmatmul.mubr.f32.gmra.mrb[0].mxu0 %v243
        %v596 = vpop.f32.mrb[0].mxu0
        %v597 = vadd.f32 %v278, %v596
        %v598 = vpop.f32.mrb[0].mxu0
        %599 = vmatprep.mubr.f32.mxu0 0.0
        %600 = vmatmul.mubr.f32.gmra.mrb[0].mxu0 %v244
        %v601 = vpop.f32.mrb[0].mxu0
        %v602 = vadd.f32 %v278, %v601
        %v603 = vpop.f32.mrb[0].mxu0
        %604 = vmatprep.mubr.f32.mxu0 0.0
        %605 = vmatmul.mubr.f32.gmra.mrb[0].mxu0 %v245
        %v606 = vpop.f32.mrb[0].mxu0
        %v607 = vadd.f32 %v278, %v606
        %v608 = vpop.f32.mrb[0].mxu0
        %609 = vmatprep.mubr.f32.mxu0 0.0
        %610 = vmatmul.mubr.f32.gmra.mrb[0].mxu0 %v246
        %v611 = vpop.f32.mrb[0].mxu0
        %v612 = vadd.f32 %v278, %v611
        %v613 = vpop.f32.mrb[0].mxu0
        %614 = vmatprep.mubr.f32.mxu0 0.0
        %615 = vmatmul.mubr.f32.gmra.mrb[0].mxu0 %v247
        %v616 = vpop.f32.mrb[0].mxu0
        %v617 = vadd.f32 %v278, %v616
        %v618 = vpop.f32.mrb[0].mxu0
        %619 = vmatprep.mubr.f32.mxu0 0.0
        %620 = vmatmul.mubr.f32.gmra.mrb[0].mxu0 %v248
        %v621 = vpop.f32.mrb[0].mxu0
        %v622 = vadd.f32 %v278, %v621
        %v623 = vpop.f32.mrb[0].mxu0
        %624 = vmatprep.mubr.f32.mxu0 0.0
        %625 = vmatmul.mubr.f32.gmra.mrb[0].mxu0 %v249
        %v626 = vpop.f32.mrb[0].mxu0
        %v627 = vadd.f32 %v278, %v626
        %v628 = vpop.f32.mrb[0].mxu0
        %629 = vmatprep.mubr.f32.mxu0 0.0
        %630 = vmatmul.mubr.f32.gmra.mrb[0].mxu0 %v250
        %v631 = vpop.f32.mrb[0].mxu0
        %v632 = vadd.f32 %v278, %v631
        %v633 = vpop.f32.mrb[0].mxu0
        %634 = vmatprep.mubr.f32.mxu0 0.0
        %635 = vmatmul.mubr.f32.gmra.mrb[0].mxu0 %v251
        %v636 = vpop.f32.mrb[0].mxu0
        %v637 = vadd.f32 %v278, %v636
        %v638 = vpop.f32.mrb[0].mxu0
        %639 = vmatprep.mubr.f32.mxu0 0.0
        %640 = vmatmul.mubr.f32.gmra.mrb[0].mxu0 %v252
        %v641 = vpop.f32.mrb[0].mxu0
        %v642 = vadd.f32 %v278, %v641
        %v643 = vpop.f32.mrb[0].mxu0
        %644 = vmatprep.mubr.f32.mxu0 0.0
        %645 = vmatmul.mubr.f32.gmra.mrb[0].mxu0 %v253
        %v646 = vpop.f32.mrb[0].mxu0
        %v647 = vadd.f32 %v278, %v646
        %v648 = vpop.f32.mrb[0].mxu0
        %649 = vmatprep.mubr.f32.mxu0 0.0
        %650 = vmatmul.mubr.f32.gmra.mrb[0].mxu0 %v254
        %v651 = vpop.f32.mrb[0].mxu0
        %v652 = vadd.f32 %v278, %v651
        %v653 = vpop.f32.mrb[0].mxu0
        %654 = vmatprep.mubr.f32.mxu0 0.0
        %655 = vmatmul.mubr.f32.gmra.mrb[0].mxu0 %v255
        %v656 = vpop.f32.mrb[0].mxu0
        %v657 = vadd.f32 %v278, %v656
        %v658 = vpop.f32.mrb[0].mxu0
        %659 = vmatprep.mubr.f32.mxu0 0.0
        %660 = vmatmul.mubr.f32.gmra.mrb[0].mxu0 %v256
        %v661 = vpop.f32.mrb[0].mxu0
        %v662 = vadd.f32 %v278, %v661
        %v663 = vpop.f32.mrb[0].mxu0
        %664 = vdwg.mxu0
        %v665 = vxor.u32 %v347, 2147483648
        %v666 = vxor.u32 %v352, 2147483648
        %v667 = vxor.u32 %v357, 2147483648
        %v668 = vxor.u32 %v362, 2147483648
        %v669 = vxor.u32 %v367, 2147483648
        %v670 = vxor.u32 %v372, 2147483648
        %v671 = vxor.u32 %v377, 2147483648
        %v672 = vxor.u32 %v382, 2147483648
        %v673 = vxor.u32 %v387, 2147483648
        %v674 = vxor.u32 %v392, 2147483648
        %v675 = vxor.u32 %v397, 2147483648
        %v676 = vxor.u32 %v402, 2147483648
        %v677 = vxor.u32 %v407, 2147483648
        %v678 = vxor.u32 %v412, 2147483648
        %v679 = vxor.u32 %v417, 2147483648
        %v680 = vxor.u32 %v422, 2147483648
        %v681 = vxor.u32 %v427, 2147483648
        %v682 = vxor.u32 %v432, 2147483648
        %v683 = vxor.u32 %v437, 2147483648
        %v684 = vxor.u32 %v442, 2147483648
        %v685 = vxor.u32 %v447, 2147483648
        %v686 = vxor.u32 %v452, 2147483648
        %v687 = vxor.u32 %v457, 2147483648
        %v688 = vxor.u32 %v462, 2147483648
        %v689 = vxor.u32 %v467, 2147483648
        %v690 = vxor.u32 %v472, 2147483648
        %v691 = vxor.u32 %v477, 2147483648
        %v692 = vxor.u32 %v482, 2147483648
        %v693 = vxor.u32 %v487, 2147483648
        %v694 = vxor.u32 %v492, 2147483648
        %v695 = vxor.u32 %v497, 2147483648
        %v696 = vxor.u32 %v502, 2147483648
        %v697 = vxor.u32 %v507, 2147483648
        %v698 = vxor.u32 %v512, 2147483648
        %v699 = vxor.u32 %v517, 2147483648
        %v700 = vxor.u32 %v522, 2147483648
        %v701 = vxor.u32 %v527, 2147483648
        %v702 = vxor.u32 %v532, 2147483648
        %v703 = vxor.u32 %v537, 2147483648
        %v704 = vxor.u32 %v542, 2147483648
        %v705 = vxor.u32 %v547, 2147483648
        %v706 = vxor.u32 %v552, 2147483648
        %v707 = vxor.u32 %v557, 2147483648
        %v708 = vxor.u32 %v562, 2147483648
        %v709 = vxor.u32 %v567, 2147483648
        %v710 = vxor.u32 %v572, 2147483648
        %v711 = vxor.u32 %v577, 2147483648
        %v712 = vxor.u32 %v582, 2147483648
        %v713 = vxor.u32 %v587, 2147483648
        %v714 = vxor.u32 %v592, 2147483648
        %v715 = vxor.u32 %v597, 2147483648
        %v716 = vxor.u32 %v602, 2147483648
        %v717 = vxor.u32 %v607, 2147483648
        %v718 = vxor.u32 %v612, 2147483648
        %v719 = vxor.u32 %v617, 2147483648
        %v720 = vxor.u32 %v622, 2147483648
        %v721 = vxor.u32 %v627, 2147483648
        %v722 = vxor.u32 %v632, 2147483648
        %v723 = vxor.u32 %v637, 2147483648
        %v724 = vxor.u32 %v642, 2147483648
        %v725 = vxor.u32 %v647, 2147483648
        %v726 = vxor.u32 %v652, 2147483648
        %v727 = vxor.u32 %v657, 2147483648
        %v728 = vxor.u32 %v662, 2147483648
        %v729 = vmul.f32 %v665, 1.442695
        %v730 = vpow.pop %v729
        %v731 = vmul.f32 %v666, 1.442695
        %v732 = vpow.pop %v731
        %v733 = vmul.f32 %v667, 1.442695
        %v734 = vpow.pop %v733
        %v735 = vmul.f32 %v668, 1.442695
        %v736 = vpow.pop %v735
        %v737 = vmul.f32 %v669, 1.442695
        %v738 = vpow.pop %v737
        %v739 = vmul.f32 %v670, 1.442695
        %v740 = vpow.pop %v739
        %v741 = vmul.f32 %v671, 1.442695
        %v742 = vpow.pop %v741
        %v743 = vmul.f32 %v672, 1.442695
        %v744 = vpow.pop %v743
        %v745 = vmul.f32 %v673, 1.442695
        %v746 = vpow.pop %v745
        %v747 = vmul.f32 %v674, 1.442695
        %v748 = vpow.pop %v747
        %v749 = vmul.f32 %v675, 1.442695
        %v750 = vpow.pop %v749
        %v751 = vmul.f32 %v676, 1.442695
        %v752 = vpow.pop %v751
        %v753 = vmul.f32 %v677, 1.442695
        %v754 = vpow.pop %v753
        %v755 = vmul.f32 %v678, 1.442695
        %v756 = vpow.pop %v755
        %v757 = vmul.f32 %v679, 1.442695
        %v758 = vpow.pop %v757
        %v759 = vmul.f32 %v680, 1.442695
        %v760 = vpow.pop %v759
        %v761 = vmul.f32 %v681, 1.442695
        %v762 = vpow.pop %v761
        %v763 = vmul.f32 %v682, 1.442695
        %v764 = vpow.pop %v763
        %v765 = vmul.f32 %v683, 1.442695
        %v766 = vpow.pop %v765
        %v767 = vmul.f32 %v684, 1.442695
        %v768 = vpow.pop %v767
        %v769 = vmul.f32 %v685, 1.442695
        %v770 = vpow.pop %v769
        %v771 = vmul.f32 %v686, 1.442695
        %v772 = vpow.pop %v771
        %v773 = vmul.f32 %v687, 1.442695
        %v774 = vpow.pop %v773
        %v775 = vmul.f32 %v688, 1.442695
        %v776 = vpow.pop %v775
        %v777 = vmul.f32 %v689, 1.442695
        %v778 = vpow.pop %v777
        %v779 = vmul.f32 %v690, 1.442695
        %v780 = vpow.pop %v779
        %v781 = vmul.f32 %v691, 1.442695
        %v782 = vpow.pop %v781
        %v783 = vmul.f32 %v692, 1.442695
        %v784 = vpow.pop %v783
        %v785 = vmul.f32 %v693, 1.442695
        %v786 = vpow.pop %v785
        %v787 = vmul.f32 %v694, 1.442695
        %v788 = vpow.pop %v787
        %v789 = vmul.f32 %v695, 1.442695
        %v790 = vpow.pop %v789
        %v791 = vmul.f32 %v696, 1.442695
        %v792 = vpow.pop %v791
        %v793 = vmul.f32 %v697, 1.442695
        %v794 = vpow.pop %v793
        %v795 = vmul.f32 %v698, 1.442695
        %v796 = vpow.pop %v795
        %v797 = vmul.f32 %v699, 1.442695
        %v798 = vpow.pop %v797
        %v799 = vmul.f32 %v700, 1.442695
        %v800 = vpow.pop %v799
        %v801 = vmul.f32 %v701, 1.442695
        %v802 = vpow.pop %v801
        %v803 = vmul.f32 %v702, 1.442695
        %v804 = vpow.pop %v803
        %v805 = vmul.f32 %v703, 1.442695
        %v806 = vpow.pop %v805
        %v807 = vmul.f32 %v704, 1.442695
        %v808 = vpow.pop %v807
        %v809 = vmul.f32 %v705, 1.442695
        %v810 = vpow.pop %v809
        %v811 = vmul.f32 %v706, 1.442695
        %v812 = vpow.pop %v811
        %v813 = vmul.f32 %v707, 1.442695
        %v814 = vpow.pop %v813
        %v815 = vmul.f32 %v708, 1.442695
        %v816 = vpow.pop %v815
        %v817 = vmul.f32 %v709, 1.442695
        %v818 = vpow.pop %v817
        %v819 = vmul.f32 %v710, 1.442695
        %v820 = vpow.pop %v819
        %v821 = vmul.f32 %v711, 1.442695
        %v822 = vpow.pop %v821
        %v823 = vmul.f32 %v712, 1.442695
        %v824 = vpow.pop %v823
        %v825 = vmul.f32 %v713, 1.442695
        %v826 = vpow.pop %v825
        %v827 = vmul.f32 %v714, 1.442695
        %v828 = vpow.pop %v827
        %v829 = vmul.f32 %v715, 1.442695
        %v830 = vpow.pop %v829
        %v831 = vmul.f32 %v716, 1.442695
        %v832 = vpow.pop %v831
        %v833 = vmul.f32 %v717, 1.442695
        %v834 = vpow.pop %v833
        %v835 = vmul.f32 %v718, 1.442695
        %v836 = vpow.pop %v835
        %v837 = vmul.f32 %v719, 1.442695
        %v838 = vpow.pop %v837
        %v839 = vmul.f32 %v720, 1.442695
        %v840 = vpow.pop %v839
        %v841 = vmul.f32 %v721, 1.442695
        %v842 = vpow.pop %v841
        %v843 = vmul.f32 %v722, 1.442695
        %v844 = vpow.pop %v843
        %v845 = vmul.f32 %v723, 1.442695
        %v846 = vpow.pop %v845
        %v847 = vmul.f32 %v724, 1.442695
        %v848 = vpow.pop %v847
        %v849 = vmul.f32 %v725, 1.442695
        %v850 = vpow.pop %v849
        %v851 = vmul.f32 %v726, 1.442695
        %v852 = vpow.pop %v851
        %v853 = vmul.f32 %v727, 1.442695
        %v854 = vpow.pop %v853
        %v855 = vmul.f32 %v728, 1.442695
        %v856 = vpow.pop %v855
        %v857 = vadd.f32 %v730, 1.0
        %v858 = vadd.f32 %v732, 1.0
        %v859 = vadd.f32 %v734, 1.0
        %v860 = vadd.f32 %v736, 1.0
        %v861 = vadd.f32 %v738, 1.0
        %v862 = vadd.f32 %v740, 1.0
        %v863 = vadd.f32 %v742, 1.0
        %v864 = vadd.f32 %v744, 1.0
        %v865 = vadd.f32 %v746, 1.0
        %v866 = vadd.f32 %v748, 1.0
        %v867 = vadd.f32 %v750, 1.0
        %v868 = vadd.f32 %v752, 1.0
        %v869 = vadd.f32 %v754, 1.0
        %v870 = vadd.f32 %v756, 1.0
        %v871 = vadd.f32 %v758, 1.0
        %v872 = vadd.f32 %v760, 1.0
        %v873 = vadd.f32 %v762, 1.0
        %v874 = vadd.f32 %v764, 1.0
        %v875 = vadd.f32 %v766, 1.0
        %v876 = vadd.f32 %v768, 1.0
        %v877 = vadd.f32 %v770, 1.0
        %v878 = vadd.f32 %v772, 1.0
        %v879 = vadd.f32 %v774, 1.0
        %v880 = vadd.f32 %v776, 1.0
        %v881 = vadd.f32 %v778, 1.0
        %v882 = vadd.f32 %v780, 1.0
        %v883 = vadd.f32 %v782, 1.0
        %v884 = vadd.f32 %v784, 1.0
        %v885 = vadd.f32 %v786, 1.0
        %v886 = vadd.f32 %v788, 1.0
        %v887 = vadd.f32 %v790, 1.0
        %v888 = vadd.f32 %v792, 1.0
        %v889 = vadd.f32 %v794, 1.0
        %v890 = vadd.f32 %v796, 1.0
        %v891 = vadd.f32 %v798, 1.0
        %v892 = vadd.f32 %v800, 1.0
        %v893 = vadd.f32 %v802, 1.0
        %v894 = vadd.f32 %v804, 1.0
        %v895 = vadd.f32 %v806, 1.0
        %v896 = vadd.f32 %v808, 1.0
        %v897 = vadd.f32 %v810, 1.0
        %v898 = vadd.f32 %v812, 1.0
        %v899 = vadd.f32 %v814, 1.0
        %v900 = vadd.f32 %v816, 1.0
        %v901 = vadd.f32 %v818, 1.0
        %v902 = vadd.f32 %v820, 1.0
        %v903 = vadd.f32 %v822, 1.0
        %v904 = vadd.f32 %v824, 1.0
        %v905 = vadd.f32 %v826, 1.0
        %v906 = vadd.f32 %v828, 1.0
        %v907 = vadd.f32 %v830, 1.0
        %v908 = vadd.f32 %v832, 1.0
        %v909 = vadd.f32 %v834, 1.0
        %v910 = vadd.f32 %v836, 1.0
        %v911 = vadd.f32 %v838, 1.0
        %v912 = vadd.f32 %v840, 1.0
        %v913 = vadd.f32 %v842, 1.0
        %v914 = vadd.f32 %v844, 1.0
        %v915 = vadd.f32 %v846, 1.0
        %v916 = vadd.f32 %v848, 1.0
        %v917 = vadd.f32 %v850, 1.0
        %v918 = vadd.f32 %v852, 1.0
        %v919 = vadd.f32 %v854, 1.0
        %v920 = vadd.f32 %v856, 1.0
        %v921 = vrcp.pop %v857
        %v922 = vmul.f32 1.0, %v921
        %v923 = vrcp.pop %v858
        %v924 = vmul.f32 1.0, %v923
        %v925 = vrcp.pop %v859
        %v926 = vmul.f32 1.0, %v925
        %v927 = vrcp.pop %v860
        %v928 = vmul.f32 1.0, %v927
        %v929 = vrcp.pop %v861
        %v930 = vmul.f32 1.0, %v929
        %v931 = vrcp.pop %v862
        %v932 = vmul.f32 1.0, %v931
        %v933 = vrcp.pop %v863
        %v934 = vmul.f32 1.0, %v933
        %v935 = vrcp.pop %v864
        %v936 = vmul.f32 1.0, %v935
        %v937 = vrcp.pop %v865
        %v938 = vmul.f32 1.0, %v937
        %v939 = vrcp.pop %v866
        %v940 = vmul.f32 1.0, %v939
        %v941 = vrcp.pop %v867
        %v942 = vmul.f32 1.0, %v941
        %v943 = vrcp.pop %v868
        %v944 = vmul.f32 1.0, %v943
        %v945 = vrcp.pop %v869
        %v946 = vmul.f32 1.0, %v945
        %v947 = vrcp.pop %v870
        %v948 = vmul.f32 1.0, %v947
        %v949 = vrcp.pop %v871
        %v950 = vmul.f32 1.0, %v949
        %v951 = vrcp.pop %v872
        %v952 = vmul.f32 1.0, %v951
        %v953 = vrcp.pop %v873
        %v954 = vmul.f32 1.0, %v953
        %v955 = vrcp.pop %v874
        %v956 = vmul.f32 1.0, %v955
        %v957 = vrcp.pop %v875
        %v958 = vmul.f32 1.0, %v957
        %v959 = vrcp.pop %v876
        %v960 = vmul.f32 1.0, %v959
        %v961 = vrcp.pop %v877
        %v962 = vmul.f32 1.0, %v961
        %v963 = vrcp.pop %v878
        %v964 = vmul.f32 1.0, %v963
        %v965 = vrcp.pop %v879
        %v966 = vmul.f32 1.0, %v965
        %v967 = vrcp.pop %v880
        %v968 = vmul.f32 1.0, %v967
        %v969 = vrcp.pop %v881
        %v970 = vmul.f32 1.0, %v969
        %v971 = vrcp.pop %v882
        %v972 = vmul.f32 1.0, %v971
        %v973 = vrcp.pop %v883
        %v974 = vmul.f32 1.0, %v973
        %v975 = vrcp.pop %v884
        %v976 = vmul.f32 1.0, %v975
        %v977 = vrcp.pop %v885
        %v978 = vmul.f32 1.0, %v977
        %v979 = vrcp.pop %v886
        %v980 = vmul.f32 1.0, %v979
        %v981 = vrcp.pop %v887
        %v982 = vmul.f32 1.0, %v981
        %v983 = vrcp.pop %v888
        %v984 = vmul.f32 1.0, %v983
        %v985 = vrcp.pop %v889
        %v986 = vmul.f32 1.0, %v985
        %v987 = vrcp.pop %v890
        %v988 = vmul.f32 1.0, %v987
        %v989 = vrcp.pop %v891
        %v990 = vmul.f32 1.0, %v989
        %v991 = vrcp.pop %v892
        %v992 = vmul.f32 1.0, %v991
        %v993 = vrcp.pop %v893
        %v994 = vmul.f32 1.0, %v993
        %v995 = vrcp.pop %v894
        %v996 = vmul.f32 1.0, %v995
        %v997 = vrcp.pop %v895
        %v998 = vmul.f32 1.0, %v997
        %v999 = vrcp.pop %v896
        %v1000 = vmul.f32 1.0, %v999
        %v1001 = vrcp.pop %v897
        %v1002 = vmul.f32 1.0, %v1001
        %v1003 = vrcp.pop %v898
        %v1004 = vmul.f32 1.0, %v1003
        %v1005 = vrcp.pop %v899
        %v1006 = vmul.f32 1.0, %v1005
        %v1007 = vrcp.pop %v900
        %v1008 = vmul.f32 1.0, %v1007
        %v1009 = vrcp.pop %v901
        %v1010 = vmul.f32 1.0, %v1009
        %v1011 = vrcp.pop %v902
        %v1012 = vmul.f32 1.0, %v1011
        %v1013 = vrcp.pop %v903
        %v1014 = vmul.f32 1.0, %v1013
        %v1015 = vrcp.pop %v904
        %v1016 = vmul.f32 1.0, %v1015
        %v1017 = vrcp.pop %v905
        %v1018 = vmul.f32 1.0, %v1017
        %v1019 = vrcp.pop %v906
        %v1020 = vmul.f32 1.0, %v1019
        %v1021 = vrcp.pop %v907
        %v1022 = vmul.f32 1.0, %v1021
        %v1023 = vrcp.pop %v908
        %v1024 = vmul.f32 1.0, %v1023
        %v1025 = vrcp.pop %v909
        %v1026 = vmul.f32 1.0, %v1025
        %v1027 = vrcp.pop %v910
        %v1028 = vmul.f32 1.0, %v1027
        %v1029 = vrcp.pop %v911
        %v1030 = vmul.f32 1.0, %v1029
        %v1031 = vrcp.pop %v912
        %v1032 = vmul.f32 1.0, %v1031
        %v1033 = vrcp.pop %v913
        %v1034 = vmul.f32 1.0, %v1033
        %v1035 = vrcp.pop %v914
        %v1036 = vmul.f32 1.0, %v1035
        %v1037 = vrcp.pop %v915
        %v1038 = vmul.f32 1.0, %v1037
        %v1039 = vrcp.pop %v916
        %v1040 = vmul.f32 1.0, %v1039
        %v1041 = vrcp.pop %v917
        %v1042 = vmul.f32 1.0, %v1041
        %v1043 = vrcp.pop %v918
        %v1044 = vmul.f32 1.0, %v1043
        %v1045 = vrcp.pop %v919
        %v1046 = vmul.f32 1.0, %v1045
        %v1047 = vrcp.pop %v920
        %v1048 = vmul.f32 1.0, %v1047
        %vm1049 = vcmask 31744
        %1050 = vst.msk [vmem:[%s191] sm:$0xff] %vm1049, %v922
        %1051 = vst.msk [vmem:[%s191 + $0x8] sm:$0xff] %vm1049, %v924
        %1052 = vst.msk [vmem:[%s191 + $0x10] sm:$0xff] %vm1049, %v926
        %1053 = vst.msk [vmem:[%s191 + $0x18] sm:$0xff] %vm1049, %v928
        %1054 = vst.msk [vmem:[%s191 + $0x20] sm:$0xff] %vm1049, %v930
        %1055 = vst.msk [vmem:[%s191 + $0x28] sm:$0xff] %vm1049, %v932
        %1056 = vst.msk [vmem:[%s191 + $0x30] sm:$0xff] %vm1049, %v934
        %1057 = vst.msk [vmem:[%s191 + $0x38] sm:$0xff] %vm1049, %v936
        %1058 = vst.msk [vmem:[%s191 + $0x40] sm:$0xff] %vm1049, %v938
        %1059 = vst.msk [vmem:[%s191 + $0x48] sm:$0xff] %vm1049, %v940
        %1060 = vst.msk [vmem:[%s191 + $0x50] sm:$0xff] %vm1049, %v942
        %1061 = vst.msk [vmem:[%s191 + $0x58] sm:$0xff] %vm1049, %v944
        %1062 = vst.msk [vmem:[%s191 + $0x60] sm:$0xff] %vm1049, %v946
        %1063 = vst.msk [vmem:[%s191 + $0x68] sm:$0xff] %vm1049, %v948
        %1064 = vst.msk [vmem:[%s191 + $0x70] sm:$0xff] %vm1049, %v950
        %1065 = vst.msk [vmem:[%s191 + $0x78] sm:$0xff] %vm1049, %v952
        %1066 = vst.msk [vmem:[%s191 + $0x80] sm:$0xff] %vm1049, %v954
        %1067 = vst.msk [vmem:[%s191 + $0x88] sm:$0xff] %vm1049, %v956
        %1068 = vst.msk [vmem:[%s191 + $0x90] sm:$0xff] %vm1049, %v958
        %1069 = vst.msk [vmem:[%s191 + $0x98] sm:$0xff] %vm1049, %v960
        %1070 = vst.msk [vmem:[%s191 + $0xa0] sm:$0xff] %vm1049, %v962
        %1071 = vst.msk [vmem:[%s191 + $0xa8] sm:$0xff] %vm1049, %v964
        %1072 = vst.msk [vmem:[%s191 + $0xb0] sm:$0xff] %vm1049, %v966
        %1073 = vst.msk [vmem:[%s191 + $0xb8] sm:$0xff] %vm1049, %v968
        %1074 = vst.msk [vmem:[%s191 + $0xc0] sm:$0xff] %vm1049, %v970
        %1075 = vst.msk [vmem:[%s191 + $0xc8] sm:$0xff] %vm1049, %v972
        %1076 = vst.msk [vmem:[%s191 + $0xd0] sm:$0xff] %vm1049, %v974
        %1077 = vst.msk [vmem:[%s191 + $0xd8] sm:$0xff] %vm1049, %v976
        %1078 = vst.msk [vmem:[%s191 + $0xe0] sm:$0xff] %vm1049, %v978
        %1079 = vst.msk [vmem:[%s191 + $0xe8] sm:$0xff] %vm1049, %v980
        %1080 = vst.msk [vmem:[%s191 + $0xf0] sm:$0xff] %vm1049, %v982
        %1081 = vst.msk [vmem:[%s191 + $0xf8] sm:$0xff] %vm1049, %v984
        %1082 = vst.msk [vmem:[%s191 + $0x100] sm:$0xff] %vm1049, %v986
        %1083 = vst.msk [vmem:[%s191 + $0x108] sm:$0xff] %vm1049, %v988
        %1084 = vst.msk [vmem:[%s191 + $0x110] sm:$0xff] %vm1049, %v990
        %1085 = vst.msk [vmem:[%s191 + $0x118] sm:$0xff] %vm1049, %v992
        %1086 = vst.msk [vmem:[%s191 + $0x120] sm:$0xff] %vm1049, %v994
        %1087 = vst.msk [vmem:[%s191 + $0x128] sm:$0xff] %vm1049, %v996
        %1088 = vst.msk [vmem:[%s191 + $0x130] sm:$0xff] %vm1049, %v998
        %1089 = vst.msk [vmem:[%s191 + $0x138] sm:$0xff] %vm1049, %v1000
        %1090 = vst.msk [vmem:[%s191 + $0x140] sm:$0xff] %vm1049, %v1002
        %1091 = vst.msk [vmem:[%s191 + $0x148] sm:$0xff] %vm1049, %v1004
        %1092 = vst.msk [vmem:[%s191 + $0x150] sm:$0xff] %vm1049, %v1006
        %1093 = vst.msk [vmem:[%s191 + $0x158] sm:$0xff] %vm1049, %v1008
        %1094 = vst.msk [vmem:[%s191 + $0x160] sm:$0xff] %vm1049, %v1010
        %1095 = vst.msk [vmem:[%s191 + $0x168] sm:$0xff] %vm1049, %v1012
        %1096 = vst.msk [vmem:[%s191 + $0x170] sm:$0xff] %vm1049, %v1014
        %1097 = vst.msk [vmem:[%s191 + $0x178] sm:$0xff] %vm1049, %v1016
        %1098 = vst.msk [vmem:[%s191 + $0x180] sm:$0xff] %vm1049, %v1018
        %1099 = vst.msk [vmem:[%s191 + $0x188] sm:$0xff] %vm1049, %v1020
        %1100 = vst.msk [vmem:[%s191 + $0x190] sm:$0xff] %vm1049, %v1022
        %1101 = vst.msk [vmem:[%s191 + $0x198] sm:$0xff] %vm1049, %v1024
        %1102 = vst.msk [vmem:[%s191 + $0x1a0] sm:$0xff] %vm1049, %v1026
        %1103 = vst.msk [vmem:[%s191 + $0x1a8] sm:$0xff] %vm1049, %v1028
        %1104 = vst.msk [vmem:[%s191 + $0x1b0] sm:$0xff] %vm1049, %v1030
        %1105 = vst.msk [vmem:[%s191 + $0x1b8] sm:$0xff] %vm1049, %v1032
        %1106 = vst.msk [vmem:[%s191 + $0x1c0] sm:$0xff] %vm1049, %v1034
        %1107 = vst.msk [vmem:[%s191 + $0x1c8] sm:$0xff] %vm1049, %v1036
        %1108 = vst.msk [vmem:[%s191 + $0x1d0] sm:$0xff] %vm1049, %v1038
        %1109 = vst.msk [vmem:[%s191 + $0x1d8] sm:$0xff] %vm1049, %v1040
        %1110 = vst.msk [vmem:[%s191 + $0x1e0] sm:$0xff] %vm1049, %v1042
        %1111 = vst.msk [vmem:[%s191 + $0x1e8] sm:$0xff] %vm1049, %v1044
        %1112 = vst.msk [vmem:[%s191 + $0x1f0] sm:$0xff] %vm1049, %v1046
        %1113 = vst.msk [vmem:[%s191 + $0x1f8] sm:$0xff] %vm1049, %v1048
        %s1114 = smul.u32 64, %s17
        %p1115 = scmp.lt.s32.totalorder %s1114, 127
        %s1116 = scalar_select %p1115, %s1114, 127
        %s1117 = smul.addr %s1116, 8
        %s1118 = scalar_lea.vmem %s3, %s1117
        // Predicated region
        $region37: #{_fused_scores_and_losses.1} parent=31 // pred_check
          %p1119 = pneg %p103
        $region38: #{_fused_scores_and_losses.1} parent=31 // pred_check_branch
          %1121 = sbr.rel (%p1119) target = $region40
        $region39: #{_fused_scores_and_losses.1} parent=31 // pred_region
          %s1122 = smul.u32 64, %s17
        $region40: #{_fused_scores_and_losses.1} parent=31 // pred_fallthru
          _
      $region32: #{_fused_scores_and_losses.1} parent=5 // pred_fallthru
        _
      %p1123 = scmp.le.s32.totalorder 2, %s12
      // Predicated region
      $region41: #{_fused_scores_and_losses.1} parent=5 // pred_check
        %p1124 = pneg %p1123
      $region42: #{_fused_scores_and_losses.1} parent=5 // pred_check_branch
        %1126 = sbr.rel (%p1124) target = $region44
      $region43: #{_fused_scores_and_losses.1} parent=5 // pred_region
        %s1127 = ssub.s32 %s12, 2
        // Predicated region
        $region45: #{_fused_scores_and_losses.1} parent=43 // pred_check
          %p1128 = pneg %p109
        $region46: #{_fused_scores_and_losses.1} parent=43 // pred_check_branch
          %1130 = sbr.rel (%p1128) target = $region48
        $region47: #{_fused_scores_and_losses.1} parent=43 // pred_region
          %s1131 = smul.u32 64, %s18
          %p1132 = scmp.lt.s32.totalorder %s1131, 127
          %s1133 = scalar_select %p1132, %s1131, 127
          %s1134 = smul.addr %s1133, 8
          %s1135 = scalar_lea.vmem %s3, %s1134
        $region48: #{_fused_scores_and_losses.1} parent=43 // pred_fallthru
          _
      $region44: #{_fused_scores_and_losses.1} parent=5 // pred_fallthru
        _
    $region6: #{_fused_scores_and_losses.1} parent=1 // loop_footer
      %s16 = sadd.s32 1, %s12
    $region7: #{_fused_scores_and_losses.1} parent=1 // loop_footer_branch
      %11 = sbr.rel target = $region3
    $region8: #{_fused_scores_and_losses.1} parent=1 // loop_exit
      _
    %1136 = vsyncpa [#allocation3], 1
    %s1137 = scalar_lea.sflag [#allocation3], 1
    %1138 = vsyncpa %s1137, 1

</llo_original>
